<compile_context>
chip_gen: v6e
topology: v6e:2x2x1
jax: 0.10.0
libtpu: 0.0.40
codegen_flags: <defaults>
</compile_context>

<pallas_src>
import functools

import jax
import jax.numpy as jnp
from jax import lax
from jax.experimental import pallas as pl
from jax.experimental.pallas import tpu as pltpu


def _int_pow(x, gamma):
    """x**gamma; chained multiplies for small integer gamma (VPU, NaN-safe)."""
    g = float(gamma)
    if g == 0.0:
        return jnp.ones_like(x)
    if g == int(g) and 1 <= int(g) <= 8:
        r = x
        for _ in range(int(g) - 1):
            r = r * x
        return r
    return x ** g  # non-integer gamma: falls back to EUP exp/log


def _focal_loss_kernel(logits_ref, target_ref, cls_ref, out_ref, *,
                       alpha, gamma, n_total, tm):
    logits = logits_ref[...].astype(jnp.float32)           # (TM, C) f32
    tgt = target_ref[...]                                   # (TM, 1) int32
    cls_ids = cls_ref[...]                                   # (1, C) int32 (hoisted iota)

    # Gather the target logit from the RAW tile so the shifted logits are
    # consumed only by the exp/sum pass (one less full-size live temporary).
    one_hot = cls_ids == tgt                                 # (TM, C) via broadcast
    tgt_logit = jnp.sum(jnp.where(one_hot, logits, 0.0),
                        axis=-1, keepdims=True)              # (TM, 1)

    # Numerically stable logsumexp; ce = logsumexp(logits) - tgt_logit.
    row_max = jnp.max(logits, axis=-1, keepdims=True)        # (TM, 1)
    sum_exp = jnp.sum(jnp.exp(logits - row_max),
                      axis=-1, keepdims=True)                # (TM, 1)
    ce = (row_max - tgt_logit) + jnp.log(sum_exp)            # per-row CE

    pt = jnp.exp(-ce)
    base = jnp.maximum(1.0 - pt, 0.0)                        # clamp rounding
    focal = alpha * _int_pow(base, gamma) * ce               # (TM, 1)

    # Mask rows of the ragged final tile BEFORE the reduction so garbage /
    # NaN in out-of-bounds rows cannot leak into the partial sum.
    row0 = pl.program_id(0) * tm
    rows = row0 + lax.broadcasted_iota(jnp.int32, focal.shape, 0)
    focal = jnp.where(rows < n_total, focal, 0.0)

    # Per-tile partial sum, broadcast into a lane-dense (8,128) output block.
    part = jnp.sum(focal)
    out_ref[...] = jnp.full(out_ref.shape, part, dtype=jnp.float32)


def _tpu_vmem_capacity_bytes():
    try:
        return int(pltpu.get_tpu_info().vmem_capacity_bytes)
    except Exception:
        return 128 * 1024 * 1024  # v5e / v6e class default


def _choose_tm(n, c, itemsize, budget_bytes):
    """Rows per tile so 2x wire buffers + ~4 f32 temporaries fit `budget_bytes`."""
    c_eff = max(128, -(-c // 128) * 128)          # layout-padded lane width
    per_row = c_eff * (2 * itemsize + 4 * 4)      # dbl-buffered wire + f32 planes
    tm = budget_bytes // per_row
    tm = max(8, min(int(tm), 2048))
    tm = (tm // 8) * 8
    n_up = -(-n // 8) * 8
    return max(8, min(tm, n_up))


def focal_loss(logits, target, *, alpha=0.25, gamma=2, reduction="mean"):
    """Pallas focal loss. logits: [N, C] float (f32 or bf16), target: [N] ints."""
    n, c = logits.shape
    target2d = target.astype(jnp.int32).reshape(n, 1)
    cls_ids = jnp.arange(c, dtype=jnp.int32).reshape(1, c)   # hoisted class ids

    itemsize = jnp.dtype(logits.dtype).itemsize
    vmem_cap = _tpu_vmem_capacity_bytes()
    # v7x-class parts (<= 64 MiB VMEM/TC, 3.2 TB/s HBM) want bigger tiles to
    # amortize per-grid-step overhead; v5e/v6e amortize fine at ~24 MiB.
    budget = (32 if vmem_cap <= 80 * 1024 * 1024 else 24) * 1024 * 1024
    vmem_limit = int(min(48 * 1024 * 1024, (vmem_cap * 3) // 4))

    tm = _choose_tm(n, c, itemsize, budget)
    num_tiles = -(-n // tm)

    kernel = functools.partial(
        _focal_loss_kernel,
        alpha=float(alpha), gamma=float(gamma), n_total=n, tm=tm,
    )

    cost = pl.CostEstimate(
        flops=8 * n * c,
        transcendentals=n * c + 4 * n,
        bytes_accessed=n * c * itemsize + n * 4 + c * 4 + num_tiles * 8 * 128 * 4,
    )

    partials = pl.pallas_call(
        kernel,
        out_shape=jax.ShapeDtypeStruct((num_tiles, 8, 128), jnp.float32),
        grid=(num_tiles,),
        in_specs=[
            pl.BlockSpec((tm, c), lambda i: (i, 0)),     # logits tile (unpadded C)
            pl.BlockSpec((tm, 1), lambda i: (i, 0)),     # target tile
            pl.BlockSpec((1, c), lambda i: (0, 0)),      # class ids, resident
        ],
        out_specs=pl.BlockSpec((1, 8, 128), lambda i: (i, 0, 0)),
        compiler_params=pltpu.CompilerParams(
            dimension_semantics=("parallel",),           # v7x shards across TCs
            vmem_limit_bytes=vmem_limit),
        cost_estimate=cost,
    )(logits, target2d, cls_ids)

    total = jnp.sum(partials[:, 0, 0])
    if reduction == "mean":
        return total / jnp.float32(n)
    elif reduction == "sum":
        return total
    else:
        # TODO(synk): reduction='none' needs a per-row output path; only the
        # scalar 'mean'/'sum' reductions are implemented in this kernel.
        raise NotImplementedError("reduction='none' not implemented")


def _focal_loss_ref(logits, target, alpha=0.25, gamma=2):
    logits = logits.astype(jnp.float32)
    lse = jax.nn.logsumexp(logits, axis=-1)
    tgt_logit = jnp.take_along_axis(logits, target[:, None], axis=-1)[:, 0]
    ce = lse - tgt_logit
    pt = jnp.exp(-ce)
    return jnp.mean(alpha * (1.0 - pt) ** gamma * ce)


if __name__ == "__main__":
    key = jax.random.PRNGKey(0)
    k1, k2, k3, k4 = jax.random.split(key, 4)

    # small batch of 8 examples, 32 classes
    N, C = 8, 32
    logits = jax.random.normal(k1, (N, C), dtype=jnp.float32)
    target = jax.random.randint(k2, (N,), 0, C, dtype=jnp.int32)
    out = jax.block_until_ready(
        focal_loss(logits, target, alpha=0.25, gamma=2, reduction="mean"))
    ref = _focal_loss_ref(logits, target)
    assert jnp.allclose(out, ref, atol=1e-5, rtol=1e-5), (out, ref)

    # ragged batch + non-multiple-of-128 class count (exercises the in-kernel
    # row mask and the unpadded class dimension)
    N2, C2 = 37, 33
    logits2 = jax.random.normal(k3, (N2, C2), dtype=jnp.float32)
    target2 = jax.random.randint(k4, (N2,), 0, C2, dtype=jnp.int32)
    out2 = jax.block_until_ready(
        focal_loss(logits2, target2, alpha=0.25, gamma=2, reduction="mean"))
    ref2 = _focal_loss_ref(logits2, target2)
    assert jnp.allclose(out2, ref2, atol=1e-5, rtol=1e-5), (out2, ref2)

    print("KERNEL_OK")
</pallas_src>

<mosaic_0001>
module attributes {stable_mosaic.version = 11 : i64} {
  func.func @_focal_loss_kernel(%arg0: i32, %arg1: memref<8x32xf32, #tpu.memory_space<vmem>>, %arg2: memref<8x1xi32, #tpu.memory_space<vmem>>, %arg3: memref<1x32xi32, #tpu.memory_space<vmem>>, %arg4: memref<1x8x128xf32, #tpu.memory_space<vmem>>) attributes {dimension_semantics = [#tpu.dimension_semantics<parallel>], iteration_bounds = array<i64: 1>, scalar_prefetch = 0 : i64, scratch_operands = 0 : i64, tpu.core_type = #tpu.core_type<tc>, window_params = [{transform_indices = @transform_0, window_bounds = array<i64: 8, 32>}, {transform_indices = @transform_1, window_bounds = array<i64: 8, 1>}, {pipeline_mode = #tpu.pipeline_mode<synchronous>, transform_indices = @transform_2, window_bounds = array<i64: 1, 32>}, {transform_indices = @transform_3, window_bounds = array<i64: 1, 8, 128>}]} {
    %c0 = arith.constant 0 : index
    %c0_0 = arith.constant 0 : index
    %0 = vector.load %arg1[%c0, %c0_0] : memref<8x32xf32, #tpu.memory_space<vmem>>, vector<8x32xf32>
    %c0_1 = arith.constant 0 : index
    %c0_2 = arith.constant 0 : index
    %1 = vector.load %arg2[%c0_1, %c0_2] : memref<8x1xi32, #tpu.memory_space<vmem>>, vector<8x1xi32>
    %c0_3 = arith.constant 0 : index
    %c0_4 = arith.constant 0 : index
    %2 = vector.load %arg3[%c0_3, %c0_4] : memref<1x32xi32, #tpu.memory_space<vmem>>, vector<1x32xi32>
    %3 = vector.broadcast %2 : vector<1x32xi32> to vector<8x32xi32>
    %4 = vector.broadcast %1 : vector<8x1xi32> to vector<8x32xi32>
    %5 = arith.cmpi eq, %3, %4 : vector<8x32xi32>
    %cst = arith.constant 0.000000e+00 : f32
    %6 = vector.broadcast %cst : f32 to vector<8x32xf32>
    %7 = arith.select %5, %0, %6 : vector<8x32xi1>, vector<8x32xf32>
    %cst_5 = arith.constant dense<0.000000e+00> : vector<8xf32>
    %8 = vector.multi_reduction <add>, %7, %cst_5 [1] : vector<8x32xf32> to vector<8xf32>
    %9 = vector.shape_cast %8 : vector<8xf32> to vector<8x1xf32>
    %cst_6 = arith.constant dense<0xFF800000> : vector<8xf32>
    %10 = vector.multi_reduction <maximumf>, %0, %cst_6 [1] : vector<8x32xf32> to vector<8xf32>
    %11 = vector.shape_cast %10 : vector<8xf32> to vector<8x1xf32>
    %12 = vector.broadcast %11 : vector<8x1xf32> to vector<8x32xf32>
    %13 = arith.subf %0, %12 : vector<8x32xf32>
    %14 = math.exp %13 : vector<8x32xf32>
    %cst_7 = arith.constant dense<0.000000e+00> : vector<8xf32>
    %15 = vector.multi_reduction <add>, %14, %cst_7 [1] : vector<8x32xf32> to vector<8xf32>
    %16 = vector.shape_cast %15 : vector<8xf32> to vector<8x1xf32>
    %17 = arith.subf %11, %9 : vector<8x1xf32>
    %18 = math.log %16 : vector<8x1xf32>
    %19 = arith.addf %17, %18 : vector<8x1xf32>
    %cst_8 = arith.constant 0.000000e+00 : f32
    %20 = vector.broadcast %cst_8 : f32 to vector<8x1xf32>
    %21 = arith.subf %20, %19 : vector<8x1xf32>
    %22 = math.exp %21 : vector<8x1xf32>
    %cst_9 = arith.constant 1.000000e+00 : f32
    %23 = vector.broadcast %cst_9 : f32 to vector<8x1xf32>
    %24 = arith.subf %23, %22 : vector<8x1xf32>
    %cst_10 = arith.constant 0.000000e+00 : f32
    %25 = vector.broadcast %cst_10 : f32 to vector<8x1xf32>
    %26 = arith.maximumf %24, %25 : vector<8x1xf32>
    %27 = arith.mulf %26, %26 : vector<8x1xf32>
    %cst_11 = arith.constant 2.500000e-01 : f32
    %28 = vector.broadcast %cst_11 : f32 to vector<8x1xf32>
    %29 = arith.mulf %28, %27 : vector<8x1xf32>
    %30 = arith.mulf %29, %19 : vector<8x1xf32>
    %c8_i32 = arith.constant 8 : i32
    %31 = arith.muli %arg0, %c8_i32 : i32
    %32 = tpu.iota {dimensions = array<i32: 0>} : vector<8x1xi32>
    %33 = vector.broadcast %31 : i32 to vector<8x1xi32>
    %34 = arith.addi %33, %32 : vector<8x1xi32>
    %c8_i32_12 = arith.constant 8 : i32
    %35 = vector.broadcast %c8_i32_12 : i32 to vector<8x1xi32>
    %36 = arith.cmpi slt, %34, %35 : vector<8x1xi32>
    %cst_13 = arith.constant 0.000000e+00 : f32
    %37 = vector.broadcast %cst_13 : f32 to vector<8x1xf32>
    %38 = arith.select %36, %30, %37 : vector<8x1xi1>, vector<8x1xf32>
    %39 = vector.shape_cast %38 : vector<8x1xf32> to vector<1x8x1xf32>
    %cst_14 = arith.constant dense<0.000000e+00> : vector<1xf32>
    %40 = vector.multi_reduction <add>, %39, %cst_14 [1, 2] : vector<1x8x1xf32> to vector<1xf32>
    %41 = vector.shape_cast %40 : vector<1xf32> to vector<1x1x1xf32>
    %42 = vector.extract %41[0, 0, 0] : f32 from vector<1x1x1xf32>
    %43 = vector.broadcast %42 : f32 to vector<1x8x128xf32>
    %c0_15 = arith.constant 0 : index
    %c0_16 = arith.constant 0 : index
    %c0_17 = arith.constant 0 : index
    %44 = vector.load %arg4[%c0_15, %c0_16, %c0_17] : memref<1x8x128xf32, #tpu.memory_space<vmem>>, vector<1x8x128xf32>
    tpu.vector_store %arg4[%c0_15, %c0_16, %c0_17], %43 {strides = array<i32>} : memref<1x8x128xf32, #tpu.memory_space<vmem>>, vector<1x8x128xf32>,
    return
  }
  func.func @transform_0(%arg0: i32) -> (i32, i32) {
    %c0_i32 = arith.constant 0 : i32
    %c0_i32_0 = arith.constant 0 : i32
    return %arg0, %c0_i32 : i32, i32
  }
  func.func @transform_1(%arg0: i32) -> (i32, i32) {
    %c0_i32 = arith.constant 0 : i32
    %c0_i32_0 = arith.constant 0 : i32
    return %arg0, %c0_i32 : i32, i32
  }
  func.func @transform_2(%arg0: i32) -> (i32, i32) {
    %c0_i32 = arith.constant 0 : i32
    %c0_i32_0 = arith.constant 0 : i32
    %c0_i32_1 = arith.constant 0 : i32
    return %c0_i32, %c0_i32_0 : i32, i32
  }
  func.func @transform_3(%arg0: i32) -> (i32, i32, i32) {
    %c0_i32 = arith.constant 0 : i32
    %c0_i32_0 = arith.constant 0 : i32
    %c0_i32_1 = arith.constant 0 : i32
    return %arg0, %c0_i32, %c0_i32_0 : i32, i32, i32
  }
}

</mosaic_0001>

<llo_original>
// kernel: tpu_custom_call.1
$region0: #{tpu_custom_call.1}
  #allocation0 [shape = 'u32[]', space=smem, size = 0x4, offset = 0x4, fixed_abs, tag = 'smem constant byte address 0x4 - core index']
  #allocation1 [shape = 'u32[144,128]{1,0:T(1,128)}', space=vmem, size = 0x12000, scoped, tag = 'internal scratch']
  %s0 = inlined_call_operand.vmem [shape: f32[8,32], index: 0, kind: input, shape index: {}]
  %s1 = inlined_call_operand.vmem [shape: s32[8,1], index: 1, kind: input, shape index: {}]
  %s2 = inlined_call_operand.vmem [shape: s32[1,32], index: 2, kind: input, shape index: {}]
  %s3 = inlined_call_operand.hbm [shape: f32[1,8,128], index: 3, kind: output, shape index: {}]
  %s4 = sld [smem:[#allocation0]]
  $region22: #{tpu_custom_call.1} parent=0
    _
  %s6 = ssub.s32 1, %s4
  %s7 = scalar_select 0, %s6, %s4
  $region1: #{tpu_custom_call.1} parent=0
    #allocation2 [shape = 'u8[4096]{0}', space=vmem, size = 0x1000, scoped, tag = 'output window, operand 0, single buffered']
    #allocation3 [shape = 's32[1]{0}', space=sflag, size = 0x4, scoped, tag = 'scoped memory for tpu_custom_call.1']
    %8 = vsyncpa [#allocation3], 0
    // Predicated region
    $region2: #{tpu_custom_call.1} parent=1 // pred_check
      _
    $region3: #{tpu_custom_call.1} parent=1 // pred_check_branch
      %10 = sbr.rel (0) target = $region5
    $region4: #{tpu_custom_call.1} parent=1 // pred_region
      _
    $region5: #{tpu_custom_call.1} parent=1 // pred_fallthru
      _
    // Predicated region
    $region6: #{tpu_custom_call.1} parent=1 // pred_check
      _
    $region7: #{tpu_custom_call.1} parent=1 // pred_check_branch
      %12 = sbr.rel (0) target = $region9
    $region8: #{tpu_custom_call.1} parent=1 // pred_region
      _
    $region9: #{tpu_custom_call.1} parent=1 // pred_fallthru
      _
    // Predicated region
    $region10: #{tpu_custom_call.1} parent=1 // pred_check
      _
    $region11: #{tpu_custom_call.1} parent=1 // pred_check_branch
      %14 = sbr.rel (0) target = $region13
    $region12: #{tpu_custom_call.1} parent=1 // pred_region
      _
    $region13: #{tpu_custom_call.1} parent=1 // pred_fallthru
      _
    %v15 = vld [vmem:[%s0] sm:$0xff]
    %v16 = vld [vmem:[%s1] sm:$0xff]
    %v17 = vld [vmem:[%s2] sm:$0x1]
    %v18 = vlaneseq
    %v19 = vshrl.u32 %v18, 7
    %v20 = vsub.s32 0, %v19
    %v21 = vrot.slane %v17, %v20
    %22 = vset.pattern.permute.xlu0 0
    %23 = vperm.xlu0 %22, %v16
    %v24 = vpop.permute.xlu0 %23
    %vm25 = vcmp.eq.s32.totalorder %v21, %v24
    %v26 = vsel %vm25, %v15, 0.0
    %vm27 = vcmask 261120
    %v28 = vsel %vm27, %v26, 0.0
    %29 = vadd.xlane.f32.xlu0 %v28
    %v30 = vpop.xlane.xlu0 %29
    %v31 = vsel %vm27, %v15, -inf
    %32 = vmax.xlane.f32.xlu0 %v31
    %v33 = vpop.xlane.xlu0 %32
    %v34 = vsub.f32 %v15, %v33
    %v35 = vmul.f32 %v34, 1.442695
    %v36 = vpow.pop %v35
    %v37 = vsel %vm27, %v36, 0.0
    %38 = vadd.xlane.f32.xlu0 %v37
    %v39 = vpop.xlane.xlu0 %38
    %v40 = vsub.f32 %v33, %v30
    %v41 = vlog2.pop %v39
    %v42 = vmul.f32 %v41, 0.6931472
    %v43 = vadd.f32 %v40, %v42
    %v44 = vsub.f32 0.0, %v43
    %v45 = vmul.f32 %v44, 1.442695
    %v46 = vpow.pop %v45
    %v47 = vsub.f32 1.0, %v46
    %v48 = vmax.f32 %v47, 0.0
    %v49 = vmul.f32 %v48, %v48
    %v50 = vmul.f32 %v49, 0.25
    %v51 = vmul.f32 %v50, %v43
    %s52 = smul.u32 0, 8
    %v53 = vlaneseq
    %v54 = vshrl.u32 %v53, 7
    %v55 = vstv %s52
    %v56 = vadd.s32 %v55, %v54
    %vm57 = vcmp.lt.s32.totalorder %v56, 8
    %v58 = vsel %vm57, %v51, 0.0
    %vm59 = vcmask 7168
    %v60 = vsel %vm59, %v58, 0.0
    %61 = vadd.xlane.f32.xlu0 %v60
    %v62 = vpop.xlane.xlu0 %61
    %v63 = vrot.slane %v62, 4
    %v64 = vadd.f32 %v62, %v63
    %v65 = vrot.slane %v64, 2
    %v66 = vadd.f32 %v64, %v65
    %v67 = vrot.slane %v66, 1
    %v68 = vadd.f32 %v66, %v67
    %s69 = vtos %v68
    %v70 = vstv %s69
    %71 = vst [vmem:[#allocation2] sm:$0xff] %v70
    // Predicated region
    $region14: #{tpu_custom_call.1} parent=1 // pred_check
      _
    $region15: #{tpu_custom_call.1} parent=1 // pred_check_branch
      %73 = sbr.rel (0) target = $region17
    $region16: #{tpu_custom_call.1} parent=1 // pred_region
      %s75 = ssub.s32 128, 128
      %76 = vsyncadd [#allocation3], %s75
      %s78 = sshll.u32 [#allocation2], 4
      %s79 = int_to_ptr.vmem [resolvable:$true] %s78
      %81 = dma.vmem_to_hbm [thread:$0]  %s79, 128, %s3, [#allocation3]
    $region17: #{tpu_custom_call.1} parent=1 // pred_fallthru
      _
    // Predicated region
    $region18: #{tpu_custom_call.1} parent=1 // pred_check
      _
    $region19: #{tpu_custom_call.1} parent=1 // pred_check_branch
      %83 = sbr.rel (0) target = $region21
    $region20: #{tpu_custom_call.1} parent=1 // pred_region
      %84 = dma.done [#allocation3], 128
    $region21: #{tpu_custom_call.1} parent=1 // pred_fallthru
      _
    %85 = vsyncpa [#allocation3], 1

</llo_original>
